<compile_context>
chip_gen: v5e
topology: v5e:2x2
jax: 0.10.0
libtpu: 0.0.40
codegen_flags: <defaults>
</compile_context>

<pallas_src>
import jax
import jax.numpy as jnp
from jax import lax
from jax.experimental import pallas as pl
from jax.experimental.pallas import tpu as pltpu

IN_FEATURES = 2916   # from nn.Linear(2916, 1)
OUT_FEATURES = 1
_MAX_TILE_B = 1024   # rows per batch tile (<= ~12 MiB of f32 x per tile)
_ROW_CHUNK = 256     # rows reduced per inner step (bounds the x*w VMEM temp)


def _pick_tile_rows(batch):
    """Rows per batch tile.

    Multiple of 8, capped at _MAX_TILE_B; for batch > 128 it is a power-of-two
    multiple of 128 chosen so the grid has roughly >= 4 steps (keeps both v7x
    TensorCores fed and the input double-buffer active)."""
    if batch <= 128:
        return max(8, ((batch + 7) // 8) * 8)
    tb = 128
    target = min(_MAX_TILE_B, max(128, batch // 4))
    while tb * 2 <= target:
        tb *= 2
    return tb


def _linear_kernel(x_ref, w_ref, b_ref, o_ref):
    # x_ref: (TB, K) VMEM block (only real HBM stream, double-buffered)
    # w_ref: (1, K)  VMEM, lane-dense along K, resident across grid steps
    # b_ref: (1, 1)  SMEM scalar
    # o_ref: (TB, 1) VMEM block
    tb = x_ref.shape[0]
    rc = min(tb, _ROW_CHUNK)
    n_chunks = tb // rc            # exact by construction of tb

    w = w_ref[...].astype(jnp.float32)           # (1, K)
    bias = b_ref[0, 0].astype(jnp.float32)

    def chunk(c, carry):
        r0 = pl.multiple_of(c * rc, rc)
        xc = x_ref[pl.ds(r0, rc), :].astype(jnp.float32)        # (rc, K)
        # VPU multiply (w broadcast along sublanes) + XLU lane reduction.
        acc = jnp.sum(xc * w, axis=-1, keepdims=True)            # (rc, 1) f32
        o_ref[pl.ds(r0, rc), :] = (acc + bias).astype(o_ref.dtype)
        return carry

    lax.fori_loop(0, n_chunks, chunk, 0, unroll=True)


def regressor_forward(x, weight, bias):
    """x: (B, 2916) f32, weight: (1, 2916) f32 (PyTorch layout), bias: (1,) f32."""
    B, K = x.shape
    assert K == IN_FEATURES

    tb = _pick_tile_rows(B)
    grid = pl.cdiv(B, tb)          # ragged last block: no padding of x needed
    b_smem = bias.reshape(1, 1)

    out = pl.pallas_call(
        _linear_kernel,
        out_shape=jax.ShapeDtypeStruct((B, OUT_FEATURES), x.dtype),
        grid_spec=pltpu.PrefetchScalarGridSpec(
            num_scalar_prefetch=0,
            grid=(grid,),
            in_specs=[
                # x: tiled over batch, full K (block == array dim along K, so
                # K=2916 not being a multiple of 128 is legal).
                pl.BlockSpec((tb, K), lambda i: (i, 0)),
                # weight: constant index_map -> fetched once, stays in VMEM.
                pl.BlockSpec((1, K), lambda i: (0, 0)),
                # bias: scalar in SMEM.
                pl.BlockSpec(memory_space=pltpu.SMEM),
            ],
            # (B, 1) output: ragged last block writes are masked by Pallas,
            # so garbage rows from the partial x read are never committed.
            out_specs=pl.BlockSpec((tb, OUT_FEATURES), lambda i: (i, 0)),
        ),
        compiler_params=pltpu.CompilerParams(
            # Batch tiles are independent -> shard across TensorCores on v7x.
            dimension_semantics=("parallel",),
            # ~24 MiB double-buffered x at tb=1024 + chunk temps + weight:
            # 48 MiB fits v5e/v6e (128 MiB phys) and v7x (64 MiB phys/TC) and
            # overrides v5e's 16 MiB scoped-VMEM default.
            vmem_limit_bytes=48 * 1024 * 1024,
        ),
    )(x, weight, b_smem)

    return out


if __name__ == "__main__":
    key = jax.random.PRNGKey(0)
    k_x, k_w, k_b = jax.random.split(key, 3)

    # Deterministic parameter init mimicking PyTorch's default Linear init:
    # U(-1/sqrt(in_features), 1/sqrt(in_features))
    bound = 1.0 / jnp.sqrt(jnp.float32(IN_FEATURES))
    weight = jax.random.uniform(
        k_w, (OUT_FEATURES, IN_FEATURES), jnp.float32, -bound, bound
    )
    bias = jax.random.uniform(k_b, (OUT_FEATURES,), jnp.float32, -bound, bound)

    # Two small batch sizes: one exact tile, one ragged multi-tile (exercises
    # the no-pad / masked-last-block path).
    for B in (8, 200):
        x = jax.random.normal(
            jax.random.fold_in(k_x, B), (B, IN_FEATURES), jnp.float32
        )
        out = jax.block_until_ready(regressor_forward(x, weight, bias))

        ref = (
            jnp.dot(x, weight.T, precision=jax.lax.Precision.HIGHEST) + bias
        )
        assert out.shape == (B, OUT_FEATURES)
        assert jnp.allclose(out, ref, atol=1e-4, rtol=1e-4), (
            f"B={B}: max abs err {jnp.max(jnp.abs(out - ref))}"
        )

    print("KERNEL_OK")
</pallas_src>

<mosaic_0001>
module attributes {stable_mosaic.version = 11 : i64} {
  func.func @_linear_kernel(%arg0: i32, %arg1: memref<8x2916xf32, #tpu.memory_space<vmem>>, %arg2: memref<1x2916xf32, #tpu.memory_space<vmem>>, %arg3: memref<1x1xf32, #tpu.memory_space<smem>>, %arg4: memref<8x1xf32, #tpu.memory_space<vmem>>) attributes {dimension_semantics = [#tpu.dimension_semantics<parallel>], iteration_bounds = array<i64: 1>, scalar_prefetch = 0 : i64, scratch_operands = 0 : i64, tpu.core_type = #tpu.core_type<tc>, window_params = [{transform_indices = @transform_0, window_bounds = array<i64: 8, 2916>}, {pipeline_mode = #tpu.pipeline_mode<synchronous>, transform_indices = @transform_1, window_bounds = array<i64: 1, 2916>}, {transform_indices = @transform_2, window_bounds = array<i64: 1, 1>}, {transform_indices = @transform_3, window_bounds = array<i64: 8, 1>}]} {
    %c0 = arith.constant 0 : index
    %c0_0 = arith.constant 0 : index
    %0 = vector.load %arg2[%c0, %c0_0] : memref<1x2916xf32, #tpu.memory_space<vmem>>, vector<1x2916xf32>
    %c0_1 = arith.constant 0 : index
    %c0_2 = arith.constant 0 : index
    %1 = memref.load %arg3[%c0_1, %c0_2] : memref<1x1xf32, #tpu.memory_space<smem>>
    %c0_i32 = arith.constant 0 : i32
    %c8_i32 = arith.constant 8 : i32
    %2 = arith.muli %c0_i32, %c8_i32 : i32
    %3 = tpu.assume_multiple %2, 8 : i32
    %4 = arith.index_cast %3 : i32 to index
    %c0_3 = arith.constant 0 : index
    %5 = vector.load %arg1[%4, %c0_3] : memref<8x2916xf32, #tpu.memory_space<vmem>>, vector<8x2916xf32>
    %6 = vector.broadcast %0 : vector<1x2916xf32> to vector<8x2916xf32>
    %7 = arith.mulf %5, %6 : vector<8x2916xf32>
    %cst = arith.constant dense<0.000000e+00> : vector<8xf32>
    %8 = vector.multi_reduction <add>, %7, %cst [1] : vector<8x2916xf32> to vector<8xf32>
    %9 = vector.shape_cast %8 : vector<8xf32> to vector<8x1xf32>
    %10 = vector.broadcast %1 : f32 to vector<8x1xf32>
    %11 = arith.addf %9, %10 : vector<8x1xf32>
    %12 = arith.index_cast %3 : i32 to index
    %c0_4 = arith.constant 0 : index
    %13 = vector.load %arg4[%12, %c0_4] : memref<8x1xf32, #tpu.memory_space<vmem>>, vector<8x1xf32>
    tpu.vector_store %arg4[%12, %c0_4], %11 {strides = array<i32>} : memref<8x1xf32, #tpu.memory_space<vmem>>, vector<8x1xf32>,
    %c1_i32 = arith.constant 1 : i32
    return
  }
  func.func @transform_0(%arg0: i32) -> (i32, i32) {
    %c0_i32 = arith.constant 0 : i32
    %c0_i32_0 = arith.constant 0 : i32
    return %arg0, %c0_i32 : i32, i32
  }
  func.func @transform_1(%arg0: i32) -> (i32, i32) {
    %c0_i32 = arith.constant 0 : i32
    %c0_i32_0 = arith.constant 0 : i32
    %c0_i32_1 = arith.constant 0 : i32
    return %c0_i32, %c0_i32_0 : i32, i32
  }
  func.func @transform_2(%arg0: i32) -> (i32, i32) {
    %c0_i32 = arith.constant 0 : i32
    %c0_i32_0 = arith.constant 0 : i32
    %c0_i32_1 = arith.constant 0 : i32
    return %c0_i32, %c0_i32_0 : i32, i32
  }
  func.func @transform_3(%arg0: i32) -> (i32, i32) {
    %c0_i32 = arith.constant 0 : i32
    %c0_i32_0 = arith.constant 0 : i32
    return %arg0, %c0_i32 : i32, i32
  }
}

</mosaic_0001>

<llo_original>
// kernel: tpu_custom_call.1
$region0: #{tpu_custom_call.1}
  #allocation0 [shape = 'u32[]', space=smem, size = 0x4, offset = 0x4, fixed_abs, tag = 'smem constant byte address 0x4 - core index']
  #allocation1 [shape = 'u32[72,128]{1,0:T(1,128)}', space=vmem, size = 0x9000, scoped, tag = 'internal scratch']
  #allocation2 [shape = 'f32[1,1]{1,0:T(1,128)S(6)}', space=smem, size = 0x200, scoped, tag = 'scoped memory for tpu_custom_call.1']
  %s0 = inlined_call_operand.hbm [shape: f32[8,2916], index: 0, kind: input, shape index: {}]
  %s1 = inlined_call_operand.hbm [shape: f32[1,2916], index: 1, kind: input, shape index: {}]
  %s2 = inlined_call_operand.<no memory space> [shape: f32[1,1], index: 2, kind: input, shape index: {}]
  %s3 = inlined_call_operand.vmem [shape: f32[8,1], index: 3, kind: output, shape index: {}]
  %s4 = sld [smem:[#allocation0]]
  $region30: #{tpu_custom_call.1} parent=0
    _
  %s6 = ssub.s32 1, %s4
  %s7 = scalar_select 0, %s6, %s4
  %8 = sst [smem:[#allocation2]] %s2
  $region1: #{tpu_custom_call.1} parent=0
    #allocation3 [shape = 'u8[94208]{0}', space=vmem, size = 0x17000, scoped, tag = 'input window, operand 0, single buffered']
    #allocation4 [shape = 's32[1]{0}', space=sflag, size = 0x4, scoped, tag = 'scoped memory for tpu_custom_call.1']
    #allocation5 [shape = 'u8[11776]{0}', space=vmem, size = 0x3000, scoped, tag = 'input window, operand 1, single buffered']
    #allocation6 [shape = 's32[1]{0}', space=sflag, size = 0x4, scoped, tag = 'scoped memory for tpu_custom_call.1']
    %9 = vsyncpa [#allocation4], 0
    %10 = vsyncpa [#allocation6], 0
    // Predicated region
    $region2: #{tpu_custom_call.1} parent=1 // pred_check
      _
    $region3: #{tpu_custom_call.1} parent=1 // pred_check_branch
      %12 = sbr.rel (0) target = $region5
    $region4: #{tpu_custom_call.1} parent=1 // pred_region
      %14 = vsyncadd [#allocation4], 0
      %s16 = sshll.u32 %s0, 4
      %s17 = int_to_ptr.hbm [resolvable:$true] %s16
      %s18 = sshll.u32 [#allocation3], 4
      %s19 = int_to_ptr.vmem [resolvable:$true] %s18
      %21 = dma.hbm_to_vmem [thread:$0]  %s17, 2944, %s19, [#allocation4]
    $region5: #{tpu_custom_call.1} parent=1 // pred_fallthru
      _
    // Predicated region
    $region6: #{tpu_custom_call.1} parent=1 // pred_check
      _
    $region7: #{tpu_custom_call.1} parent=1 // pred_check_branch
      %23 = sbr.rel (0) target = $region9
    $region8: #{tpu_custom_call.1} parent=1 // pred_region
      %25 = vsyncadd [#allocation6], 0
      %s27 = sshll.u32 %s1, 4
      %s28 = int_to_ptr.hbm [resolvable:$true] %s27
      %s29 = sshll.u32 [#allocation5], 4
      %s30 = int_to_ptr.vmem [resolvable:$true] %s29
      %32 = dma.hbm_to_vmem [thread:$0]  %s28, 368, %s30, [#allocation6]
    $region9: #{tpu_custom_call.1} parent=1 // pred_fallthru
      _
    // Predicated region
    $region10: #{tpu_custom_call.1} parent=1 // pred_check
      _
    $region11: #{tpu_custom_call.1} parent=1 // pred_check_branch
      %34 = sbr.rel (0) target = $region13
    $region12: #{tpu_custom_call.1} parent=1 // pred_region
      _
    $region13: #{tpu_custom_call.1} parent=1 // pred_fallthru
      _
    // Predicated region
    $region14: #{tpu_custom_call.1} parent=1 // pred_check
      _
    $region15: #{tpu_custom_call.1} parent=1 // pred_check_branch
      %36 = sbr.rel (0) target = $region17
    $region16: #{tpu_custom_call.1} parent=1 // pred_region
      %38 = dma.done [#allocation4], 2944
    $region17: #{tpu_custom_call.1} parent=1 // pred_fallthru
      _
    // Predicated region
    $region18: #{tpu_custom_call.1} parent=1 // pred_check
      _
    $region19: #{tpu_custom_call.1} parent=1 // pred_check_branch
      %40 = sbr.rel (0) target = $region21
    $region20: #{tpu_custom_call.1} parent=1 // pred_region
      %42 = dma.done [#allocation6], 368
    $region21: #{tpu_custom_call.1} parent=1 // pred_fallthru
      _
    %v43 = vld [vmem:[#allocation5] sm:$0xff]
    %v44 = vld [vmem:[#allocation5 + $0x8] sm:$0xff]
    %v45 = vld [vmem:[#allocation5 + $0x10] sm:$0x7f]
    %s46 = sld [smem:[#allocation2]]
    %s47 = smul.u32 0, 23
    %s48 = smul.addr %s47, 8
    %s49 = scalar_lea.vmem [#allocation3], %s48
    %v50 = vld [vmem:[%s49] sm:$0xff]
    %v51 = vld [vmem:[%s49 + $0x8] sm:$0xff]
    %v52 = vld [vmem:[%s49 + $0x10] sm:$0xff]
    %v53 = vld [vmem:[%s49 + $0x18] sm:$0xff]
    %v54 = vld [vmem:[%s49 + $0x20] sm:$0xff]
    %v55 = vld [vmem:[%s49 + $0x28] sm:$0xff]
    %v56 = vld [vmem:[%s49 + $0x30] sm:$0xff]
    %v57 = vld [vmem:[%s49 + $0x38] sm:$0xff]
    %v58 = vld [vmem:[%s49 + $0x40] sm:$0xff]
    %v59 = vld [vmem:[%s49 + $0x48] sm:$0xff]
    %v60 = vld [vmem:[%s49 + $0x50] sm:$0xff]
    %v61 = vld [vmem:[%s49 + $0x58] sm:$0xff]
    %v62 = vld [vmem:[%s49 + $0x60] sm:$0xff]
    %v63 = vld [vmem:[%s49 + $0x68] sm:$0xff]
    %v64 = vld [vmem:[%s49 + $0x70] sm:$0xff]
    %v65 = vld [vmem:[%s49 + $0x78] sm:$0xff]
    %v66 = vld [vmem:[%s49 + $0x80] sm:$0xff]
    %v67 = vld [vmem:[%s49 + $0x88] sm:$0xff]
    %v68 = vld [vmem:[%s49 + $0x90] sm:$0xff]
    %v69 = vld [vmem:[%s49 + $0x98] sm:$0xff]
    %v70 = vld [vmem:[%s49 + $0xa0] sm:$0xff]
    %v71 = vld [vmem:[%s49 + $0xa8] sm:$0xff]
    %v72 = vld [vmem:[%s49 + $0xb0] sm:$0xff]
    %v76 = vperm.slane %v43, 0
    %v77 = vperm.slane %v43, 1
    %v78 = vperm.slane %v43, 2
    %v79 = vperm.slane %v43, 3
    %v80 = vperm.slane %v43, 4
    %v81 = vperm.slane %v43, 5
    %v82 = vperm.slane %v43, 6
    %v83 = vperm.slane %v43, 7
    %v84 = vperm.slane %v44, 0
    %v85 = vperm.slane %v44, 1
    %v86 = vperm.slane %v44, 2
    %v87 = vperm.slane %v44, 3
    %v88 = vperm.slane %v44, 4
    %v89 = vperm.slane %v44, 5
    %v90 = vperm.slane %v44, 6
    %v91 = vperm.slane %v44, 7
    %v92 = vperm.slane %v45, 0
    %v93 = vperm.slane %v45, 1
    %v94 = vperm.slane %v45, 2
    %v95 = vperm.slane %v45, 3
    %v96 = vperm.slane %v45, 4
    %v97 = vperm.slane %v45, 5
    %v98 = vperm.slane %v45, 6
    %v122 = vmul.f32 %v50, %v76
    %v123 = vmul.f32 %v51, %v77
    %v124 = vmul.f32 %v52, %v78
    %v125 = vmul.f32 %v53, %v79
    %v126 = vmul.f32 %v54, %v80
    %v127 = vmul.f32 %v55, %v81
    %v128 = vmul.f32 %v56, %v82
    %v129 = vmul.f32 %v57, %v83
    %v130 = vmul.f32 %v58, %v84
    %v131 = vmul.f32 %v59, %v85
    %v132 = vmul.f32 %v60, %v86
    %v133 = vmul.f32 %v61, %v87
    %v134 = vmul.f32 %v62, %v88
    %v135 = vmul.f32 %v63, %v89
    %v136 = vmul.f32 %v64, %v90
    %v137 = vmul.f32 %v65, %v91
    %v138 = vmul.f32 %v66, %v92
    %v139 = vmul.f32 %v67, %v93
    %v140 = vmul.f32 %v68, %v94
    %v141 = vmul.f32 %v69, %v95
    %v142 = vmul.f32 %v70, %v96
    %v143 = vmul.f32 %v71, %v97
    %v144 = vmul.f32 %v72, %v98
    %v145 = vadd.f32 %v122, %v123
    %v146 = vadd.f32 %v145, %v124
    %v147 = vadd.f32 %v146, %v125
    %v148 = vadd.f32 %v147, %v126
    %v149 = vadd.f32 %v148, %v127
    %v150 = vadd.f32 %v149, %v128
    %v151 = vadd.f32 %v150, %v129
    %v152 = vadd.f32 %v151, %v130
    %v153 = vadd.f32 %v152, %v131
    %v154 = vadd.f32 %v153, %v132
    %v155 = vadd.f32 %v154, %v133
    %v156 = vadd.f32 %v155, %v134
    %v157 = vadd.f32 %v156, %v135
    %v158 = vadd.f32 %v157, %v136
    %v159 = vadd.f32 %v158, %v137
    %v160 = vadd.f32 %v159, %v138
    %v161 = vadd.f32 %v160, %v139
    %v162 = vadd.f32 %v161, %v140
    %v163 = vadd.f32 %v162, %v141
    %v164 = vadd.f32 %v163, %v142
    %v165 = vadd.f32 %v164, %v143
    %vm166 = vcmask 818176
    %v167 = vsel %vm166, %v144, 0.0
    %v168 = vadd.f32 %v165, %v167
    %169 = vadd.xlane.f32.xlu0 %v168
    %v170 = vpop.xlane.xlu0 %169
    %v171 = vstv %s46
    %v172 = vadd.f32 %v170, %v171
    %vm173 = vcmask 7168
    %174 = vst.msk [vmem:[%s3] sm:$0xff] %vm173, %v172
    // Predicated region
    $region22: #{tpu_custom_call.1} parent=1 // pred_check
      _
    $region23: #{tpu_custom_call.1} parent=1 // pred_check_branch
      %176 = sbr.rel (0) target = $region25
    $region24: #{tpu_custom_call.1} parent=1 // pred_region
      _
    $region25: #{tpu_custom_call.1} parent=1 // pred_fallthru
      _
    // Predicated region
    $region26: #{tpu_custom_call.1} parent=1 // pred_check
      _
    $region27: #{tpu_custom_call.1} parent=1 // pred_check_branch
      %178 = sbr.rel (0) target = $region29
    $region28: #{tpu_custom_call.1} parent=1 // pred_region
      _
    $region29: #{tpu_custom_call.1} parent=1 // pred_fallthru
      _
    %179 = vsyncpa [#allocation4], 1
    %180 = vsyncpa [#allocation6], 1

</llo_original>
